<compile_context>
chip_gen: v5e
topology: v5e:2x2
jax: 0.10.0
libtpu: 0.0.40
codegen_flags: <defaults>
</compile_context>

<pallas_src>
import functools

import jax
import jax.numpy as jnp
from jax import lax
from jax.experimental import pallas as pl
from jax.experimental.pallas import tpu as pltpu


def _logreg_kernel(x_ref, w_ref, o_ref):
    # x_ref: (TM, D)   VMEM  (batch tile)
    # w_ref: (Rp, D)   VMEM  (PyTorch-layout weight, R padded to lane-dense, resident)
    # o_ref: (TM, Rp)  VMEM  (lane-dense output tile)
    logits = lax.dot_general(
        x_ref[...],
        w_ref[...],
        dimension_numbers=(((1,), (1,)), ((), ())),  # contract x's D with w's D
        preferred_element_type=jnp.float32,
    )
    # sigmoid(z) = 1 / (1 + exp(-z)); exp -> EUP, approx reciprocal -> EUP (free slots).
    e = jnp.exp(-logits)
    o_ref[...] = pl.reciprocal(1.0 + e, approx=True).astype(o_ref.dtype)


@functools.partial(jax.jit, static_argnames=("block_b",))
def logistic_regression(x, weight, *, block_b=512):
    """x: (B, input_dim) f32, weight: (result_dim, input_dim) f32 (PyTorch layout)."""
    B, D = x.shape
    R, D2 = weight.shape
    assert D == D2

    # Pad the output/result dimension up to a multiple of 128 -> lane-dense stores.
    Rp = pl.cdiv(R, 128) * 128
    w_p = jnp.pad(weight, ((0, Rp - R), (0, 0))) if Rp != R else weight

    # Batch tile: multiple of 8 (sublane), capped at block_b.
    # block_b=512 keeps the double-buffered working set small enough for the
    # 32 MiB scoped VMEM default on v6e/v7x for typical D; raise block_b (and
    # vmem_limit_bytes) for very large D on v5e/v6e if desired.
    TM = max(8, min(block_b, ((B + 7) // 8) * 8))
    Bp = pl.cdiv(B, TM) * TM
    x_p = jnp.pad(x, ((0, Bp - B), (0, 0))) if Bp != B else x

    grid = (Bp // TM,)

    out = pl.pallas_call(
        _logreg_kernel,
        out_shape=jax.ShapeDtypeStruct((Bp, Rp), jnp.float32),
        grid_spec=pl.GridSpec(
            grid=grid,
            in_specs=[
                pl.BlockSpec((TM, D), lambda i: (i, 0)),   # stream batch tiles
                pl.BlockSpec((Rp, D), lambda i: (0, 0)),   # weight resident across grid
            ],
            out_specs=pl.BlockSpec((TM, Rp), lambda i: (i, 0)),
        ),
        compiler_params=pltpu.CompilerParams(
            dimension_semantics=("parallel",),  # batch tiles are independent
        ),
        cost_estimate=pl.CostEstimate(
            flops=2 * Bp * D * Rp,
            transcendentals=Bp * Rp,
            bytes_accessed=4 * (Bp * D + Rp * D + Bp * Rp),
        ),
    )(x_p, w_p)

    # Strip batch padding and the zero-padded result columns (they hold sigmoid(0)=0.5).
    return out[:B, :R]


if __name__ == "__main__":
    # Small shapes consistent with the module: input_dim=32, result_dim=16, batch=8.
    batch, input_dim, result_dim = 8, 32, 16

    key = jax.random.PRNGKey(0)
    kx, kw = jax.random.split(key)
    x = jax.random.normal(kx, (batch, input_dim), dtype=jnp.float32)
    # Deterministic init mimicking nn.Linear's uniform(-1/sqrt(in), 1/sqrt(in)).
    bound = 1.0 / jnp.sqrt(jnp.float32(input_dim))
    weight = jax.random.uniform(
        kw, (result_dim, input_dim), dtype=jnp.float32, minval=-bound, maxval=bound
    )

    out = logistic_regression(x, weight)
    jax.block_until_ready(out)

    # Reference check in plain JAX (tolerance relaxed for the EUP approx reciprocal).
    ref = jax.nn.sigmoid(x @ weight.T)
    assert out.shape == (batch, result_dim)
    assert jnp.allclose(out, ref, atol=5e-3, rtol=5e-3), float(jnp.max(jnp.abs(out - ref)))
    print("KERNEL_OK")
</pallas_src>

<mosaic_0001>
module attributes {stable_mosaic.version = 11 : i64} {
  func.func @_logreg_kernel(%arg0: i32, %arg1: memref<8x32xf32, #tpu.memory_space<vmem>>, %arg2: memref<128x32xf32, #tpu.memory_space<vmem>>, %arg3: memref<8x128xf32, #tpu.memory_space<vmem>>) attributes {dimension_semantics = [#tpu.dimension_semantics<parallel>], iteration_bounds = array<i64: 1>, scalar_prefetch = 0 : i64, scratch_operands = 0 : i64, tpu.core_type = #tpu.core_type<tc>, window_params = [{transform_indices = @transform_0, window_bounds = array<i64: 8, 32>}, {pipeline_mode = #tpu.pipeline_mode<synchronous>, transform_indices = @transform_1, window_bounds = array<i64: 128, 32>}, {transform_indices = @transform_2, window_bounds = array<i64: 8, 128>}]} {
    %c0 = arith.constant 0 : index
    %c0_0 = arith.constant 0 : index
    %0 = vector.load %arg1[%c0, %c0_0] : memref<8x32xf32, #tpu.memory_space<vmem>>, vector<8x32xf32>
    %c0_1 = arith.constant 0 : index
    %c0_2 = arith.constant 0 : index
    %1 = vector.load %arg2[%c0_1, %c0_2] : memref<128x32xf32, #tpu.memory_space<vmem>>, vector<128x32xf32>
    %cst = arith.constant dense<0.000000e+00> : vector<8x128xf32>
    %2 = tpu.matmul %0, %1, %cst {dimension_numbers = #tpu.dot_dimension_numbers<[1], [1], [0], [0], [0, 0, 1, 0], [], []>} : vector<8x32xf32>, vector<128x32xf32>, vector<8x128xf32> -> vector<8x128xf32>
    %cst_3 = arith.constant 0.000000e+00 : f32
    %3 = vector.broadcast %cst_3 : f32 to vector<8x128xf32>
    %4 = arith.subf %3, %2 : vector<8x128xf32>
    %5 = math.exp %4 : vector<8x128xf32>
    %cst_4 = arith.constant 1.000000e+00 : f32
    %6 = vector.broadcast %cst_4 : f32 to vector<8x128xf32>
    %7 = arith.addf %6, %5 : vector<8x128xf32>
    %8 = tpu.reciprocal %7 {approx = true} : vector<8x128xf32> -> vector<8x128xf32>
    %c0_5 = arith.constant 0 : index
    %c0_6 = arith.constant 0 : index
    %9 = vector.load %arg3[%c0_5, %c0_6] : memref<8x128xf32, #tpu.memory_space<vmem>>, vector<8x128xf32>
    tpu.vector_store %arg3[%c0_5, %c0_6], %8 {strides = array<i32>} : memref<8x128xf32, #tpu.memory_space<vmem>>, vector<8x128xf32>,
    return
  }
  func.func @transform_0(%arg0: i32) -> (i32, i32) {
    %c0_i32 = arith.constant 0 : i32
    %c0_i32_0 = arith.constant 0 : i32
    return %arg0, %c0_i32 : i32, i32
  }
  func.func @transform_1(%arg0: i32) -> (i32, i32) {
    %c0_i32 = arith.constant 0 : i32
    %c0_i32_0 = arith.constant 0 : i32
    %c0_i32_1 = arith.constant 0 : i32
    return %c0_i32, %c0_i32_0 : i32, i32
  }
  func.func @transform_2(%arg0: i32) -> (i32, i32) {
    %c0_i32 = arith.constant 0 : i32
    %c0_i32_0 = arith.constant 0 : i32
    return %arg0, %c0_i32 : i32, i32
  }
}

</mosaic_0001>

<llo_original>
// kernel: logistic_regression.1
$region0: #{logistic_regression.1}
  #allocation0 [shape = 'u32[]', space=smem, size = 0x4, offset = 0x4, fixed_abs, tag = 'smem constant byte address 0x4 - core index']
  #allocation1 [shape = 'u32[72,128]{1,0:T(1,128)}', space=vmem, size = 0x9000, scoped, tag = 'internal scratch']
  %s0 = inlined_call_operand.vmem [shape: f32[8,32], index: 0, kind: input, shape index: {}]
  %s1 = inlined_call_operand.vmem [shape: f32[128,32], index: 1, kind: input, shape index: {}]
  %s2 = inlined_call_operand.hbm [shape: f32[8,128], index: 2, kind: output, shape index: {}]
  %s3 = sld [smem:[#allocation0]]
  $region18: #{logistic_regression.1} parent=0
    _
  %s5 = ssub.s32 1, %s3
  %s6 = scalar_select 0, %s5, %s3
  $region1: #{logistic_regression.1} parent=0
    #allocation2 [shape = 'u8[4096]{0}', space=vmem, size = 0x1000, scoped, tag = 'output window, operand 0, single buffered']
    #allocation3 [shape = 's32[1]{0}', space=sflag, size = 0x4, scoped, tag = 'scoped memory for logistic_regression.1']
    %7 = vsyncpa [#allocation3], 0
    // Predicated region
    $region2: #{logistic_regression.1} parent=1 // pred_check
      _
    $region3: #{logistic_regression.1} parent=1 // pred_check_branch
      %9 = sbr.rel (0) target = $region5
    $region4: #{logistic_regression.1} parent=1 // pred_region
      _
    $region5: #{logistic_regression.1} parent=1 // pred_fallthru
      _
    // Predicated region
    $region6: #{logistic_regression.1} parent=1 // pred_check
      _
    $region7: #{logistic_regression.1} parent=1 // pred_check_branch
      %11 = sbr.rel (0) target = $region9
    $region8: #{logistic_regression.1} parent=1 // pred_region
      _
    $region9: #{logistic_regression.1} parent=1 // pred_fallthru
      _
    %v12 = vld [vmem:[%s0] sm:$0xff]
    %v13 = vld [vmem:[%s1] sm:$0xff]
    %v14 = vld [vmem:[%s1 + $0x8] sm:$0xff]
    %v15 = vld [vmem:[%s1 + $0x10] sm:$0xff]
    %v16 = vld [vmem:[%s1 + $0x18] sm:$0xff]
    %v17 = vld [vmem:[%s1 + $0x20] sm:$0xff]
    %v18 = vld [vmem:[%s1 + $0x28] sm:$0xff]
    %v19 = vld [vmem:[%s1 + $0x30] sm:$0xff]
    %v20 = vld [vmem:[%s1 + $0x38] sm:$0xff]
    %v21 = vld [vmem:[%s1 + $0x40] sm:$0xff]
    %v22 = vld [vmem:[%s1 + $0x48] sm:$0xff]
    %v23 = vld [vmem:[%s1 + $0x50] sm:$0xff]
    %v24 = vld [vmem:[%s1 + $0x58] sm:$0xff]
    %v25 = vld [vmem:[%s1 + $0x60] sm:$0xff]
    %v26 = vld [vmem:[%s1 + $0x68] sm:$0xff]
    %v27 = vld [vmem:[%s1 + $0x70] sm:$0xff]
    %v28 = vld [vmem:[%s1 + $0x78] sm:$0xff]
    %vm29 = vcmask 261120
    %v31 = vsel %vm29, %v12, 0
    %v34 = vsel %vm29, %v13, 0
    %v37 = vsel %vm29, %v14, 0
    %v40 = vsel %vm29, %v15, 0
    %v43 = vsel %vm29, %v16, 0
    %v46 = vsel %vm29, %v17, 0
    %v49 = vsel %vm29, %v18, 0
    %v52 = vsel %vm29, %v19, 0
    %v55 = vsel %vm29, %v20, 0
    %v58 = vsel %vm29, %v21, 0
    %v61 = vsel %vm29, %v22, 0
    %v64 = vsel %vm29, %v23, 0
    %v67 = vsel %vm29, %v24, 0
    %v70 = vsel %vm29, %v25, 0
    %v73 = vsel %vm29, %v26, 0
    %v76 = vsel %vm29, %v27, 0
    %v79 = vsel %vm29, %v28, 0
    %81 = vmatpush.xpose.msra.mxu0 %v79
    %82 = vmatpush.xpose.msra.mxu0 %v76
    %83 = vmatpush.xpose.msra.mxu0 %v73
    %84 = vmatpush.xpose.msra.mxu0 %v70
    %85 = vmatpush.xpose.msra.mxu0 %v67
    %86 = vmatpush.xpose.msra.mxu0 %v64
    %87 = vmatpush.xpose.msra.mxu0 %v61
    %88 = vmatpush.xpose.msra.mxu0 %v58
    %89 = vmatpush.xpose.msra.mxu0 %v55
    %90 = vmatpush.xpose.msra.mxu0 %v52
    %91 = vmatpush.xpose.msra.mxu0 %v49
    %92 = vmatpush.xpose.msra.mxu0 %v46
    %93 = vmatpush.xpose.msra.mxu0 %v43
    %94 = vmatpush.xpose.msra.mxu0 %v40
    %95 = vmatpush.xpose.msra.mxu0 %v37
    %96 = vmatpush.xpose.msra.mxu0 %v34
    %97 = vmatmul.f32.gmra.mxu0 %v31
    %v98 = vpop.f32.mrf.mxu0
    %v99 = vadd.f32 0.0, %v98
    %100 = vdwg.mxu0
    %v101 = vsub.f32 0.0, %v99
    %v102 = vmul.f32 %v101, 1.442695
    %v103 = vpow.pop %v102
    %v104 = vadd.f32 %v103, 1.0
    %v105 = vrcp.pop %v104
    %106 = vst [vmem:[#allocation2] sm:$0xff] %v105
    // Predicated region
    $region10: #{logistic_regression.1} parent=1 // pred_check
      _
    $region11: #{logistic_regression.1} parent=1 // pred_check_branch
      %108 = sbr.rel (0) target = $region13
    $region12: #{logistic_regression.1} parent=1 // pred_region
      %110 = vsyncadd [#allocation3], 0
      %s112 = sshll.u32 [#allocation2], 4
      %s113 = int_to_ptr.vmem [resolvable:$true] %s112
      %s114 = sshll.u32 %s2, 4
      %s115 = int_to_ptr.hbm [resolvable:$true] %s114
      %117 = dma.vmem_to_hbm [thread:$0]  %s113, 128, %s115, [#allocation3]
    $region13: #{logistic_regression.1} parent=1 // pred_fallthru
      _
    // Predicated region
    $region14: #{logistic_regression.1} parent=1 // pred_check
      _
    $region15: #{logistic_regression.1} parent=1 // pred_check_branch
      %119 = sbr.rel (0) target = $region17
    $region16: #{logistic_regression.1} parent=1 // pred_region
      %121 = dma.done [#allocation3], 128
    $region17: #{logistic_regression.1} parent=1 // pred_fallthru
      _
    %122 = vsyncpa [#allocation3], 1

</llo_original>
